<compile_context>
chip_gen: v5e
topology: v5e:2x2
jax: 0.10.0
libtpu: 0.0.40
codegen_flags: <defaults>
</compile_context>

<pallas_src>
import jax
import jax.numpy as jnp
from jax.experimental import pallas as pl
from jax.experimental.pallas import tpu as pltpu


def _identity_kernel(x_ref, o_ref):
    # encode(x) = x, decode(x) = x  ->  pure copy of the tile.
    o_ref[...] = x_ref[...]


_MAX_LANES = 4096                     # lane-dense last dim (multiple of 128)
_TARGET_TILE_BYTES = 4 * 1024 * 1024  # ~4 MiB/tile; 4x (dbl-buffered in+out)
                                      # stays well under v7x's 64 MiB VMEM.


def _copy_2d(x2d: jax.Array) -> jax.Array:
    """Lane-dense tiled identity copy of a 2D slab through VMEM."""
    rows, lanes = x2d.shape
    itemsize = jnp.dtype(x2d.dtype).itemsize
    # Native packed sublane tile: 8 rows for 32-bit, 16 for 16-bit, 32 for 8-bit.
    sublane = max(8, 32 // itemsize)

    if rows <= sublane:
        # Full-extent block along rows is always layout-legal.
        block_rows = rows
    else:
        target_rows = max(sublane, _TARGET_TILE_BYTES // (lanes * itemsize))
        block_rows = min(rows, target_rows)
        block_rows = max(sublane, (block_rows // sublane) * sublane)
        if block_rows >= rows:
            block_rows = rows

    grid = (pl.cdiv(rows, block_rows),)

    return pl.pallas_call(
        _identity_kernel,
        out_shape=jax.ShapeDtypeStruct((rows, lanes), x2d.dtype),
        grid_spec=pltpu.PrefetchScalarGridSpec(
            num_scalar_prefetch=0,
            grid=grid,
            in_specs=[pl.BlockSpec((block_rows, lanes), lambda i: (i, 0))],
            out_specs=pl.BlockSpec((block_rows, lanes), lambda i: (i, 0)),
        ),
        input_output_aliases={0: 0},
        compiler_params=pltpu.CompilerParams(
            dimension_semantics=("parallel",),
        ),
    )(x2d)


@jax.jit
def autoencoder_forward(x: jax.Array) -> jax.Array:
    """Identity forward pass of Autoencoder, run through a Pallas TPU kernel."""
    total = x.size
    if total == 0:
        return x

    if total % 128 == 0:
        # Grow the lane dim to the largest multiple of 128 (<= _MAX_LANES)
        # that divides the element count -> wide, unmasked vector stores.
        lanes = 128
        while lanes * 2 <= _MAX_LANES and total % (lanes * 2) == 0:
            lanes *= 2
        rows = total // lanes
        x2d = x.reshape(rows, lanes)  # contiguous reshape: bitcast under jit.
        out2d = _copy_2d(x2d)
        return out2d.reshape(x.shape)

    # Fallback for element counts not divisible by 128: single full-extent
    # block (always layout-legal). Fine for small tensors.
    # TODO(synk): very large non-128-multiple tensors would want chunked DMA.
    return pl.pallas_call(
        _identity_kernel,
        out_shape=jax.ShapeDtypeStruct(x.shape, x.dtype),
        input_output_aliases={0: 0},
    )(x)


if __name__ == "__main__":
    key = jax.random.PRNGKey(0)
    # Small NCHW input consistent with a conv-style autoencoder.
    x = jax.random.normal(key, (2, 4, 16, 16), dtype=jnp.float32)

    y = autoencoder_forward(x)
    jax.block_until_ready(y)

    # Forward is identity — verify exact reproduction of semantics.
    assert y.shape == x.shape
    assert y.dtype == x.dtype
    assert bool(jnp.all(y == x))

    print("KERNEL_OK")
</pallas_src>

<mosaic_0001>
module attributes {stable_mosaic.version = 11 : i64} {
  func.func @_identity_kernel(%arg0: i32, %arg1: memref<1x2048xf32, #tpu.memory_space<vmem>>, %arg2: memref<1x2048xf32, #tpu.memory_space<vmem>>) attributes {dimension_semantics = [#tpu.dimension_semantics<parallel>], iteration_bounds = array<i64: 1>, scalar_prefetch = 0 : i64, scratch_operands = 0 : i64, tpu.core_type = #tpu.core_type<tc>, window_params = [{transform_indices = @transform_0, window_bounds = array<i64: 1, 2048>}, {transform_indices = @transform_1, window_bounds = array<i64: 1, 2048>}]} {
    %c0 = arith.constant 0 : index
    %c0_0 = arith.constant 0 : index
    %0 = vector.load %arg1[%c0, %c0_0] : memref<1x2048xf32, #tpu.memory_space<vmem>>, vector<1x2048xf32>
    %c0_1 = arith.constant 0 : index
    %c0_2 = arith.constant 0 : index
    %1 = vector.load %arg2[%c0_1, %c0_2] : memref<1x2048xf32, #tpu.memory_space<vmem>>, vector<1x2048xf32>
    tpu.vector_store %arg2[%c0_1, %c0_2], %0 {strides = array<i32>} : memref<1x2048xf32, #tpu.memory_space<vmem>>, vector<1x2048xf32>,
    return
  }
  func.func @transform_0(%arg0: i32) -> (i32, i32) {
    %c0_i32 = arith.constant 0 : i32
    %c0_i32_0 = arith.constant 0 : i32
    return %arg0, %c0_i32 : i32, i32
  }
  func.func @transform_1(%arg0: i32) -> (i32, i32) {
    %c0_i32 = arith.constant 0 : i32
    %c0_i32_0 = arith.constant 0 : i32
    return %arg0, %c0_i32 : i32, i32
  }
}

</mosaic_0001>

<llo_original>
// kernel: autoencoder_forward.1
$region0: #{autoencoder_forward.1}
  #allocation0 [shape = 'u32[]', space=smem, size = 0x4, offset = 0x4, fixed_abs, tag = 'smem constant byte address 0x4 - core index']
  #allocation1 [shape = 'u32[72,128]{1,0:T(1,128)}', space=vmem, size = 0x9000, scoped, tag = 'internal scratch']
  %s0 = inlined_call_operand.vmem [shape: f32[1,2048], index: 0, kind: input, shape index: {}, may-alias: {0,1}]
  %s1 = inlined_call_operand.vmem [shape: f32[1,2048], index: 1, kind: output, shape index: {}, may-alias: {0,1}]
  %s2 = sld [smem:[#allocation0]]
  $region14: #{autoencoder_forward.1} parent=0
    _
  %s4 = ssub.s32 1, %s2
  %s5 = scalar_select 0, %s4, %s2
  // Predicated region
  $region2: #{autoencoder_forward.1} parent=0 // pred_check
    _
  $region3: #{autoencoder_forward.1} parent=0 // pred_check_branch
    %7 = sbr.rel (0) target = $region5
  $region4: #{autoencoder_forward.1} parent=0 // pred_region
    _
  $region5: #{autoencoder_forward.1} parent=0 // pred_fallthru
    _
  %v8 = vld [vmem:[%s0] sm:$0xff]
  %v9 = vld [vmem:[%s0 + $0x8] sm:$0xff]
  %10 = vst [vmem:[%s1] sm:$0xff] %v8
  %11 = vst [vmem:[%s1 + $0x8] sm:$0xff] %v9
  // Predicated region
  $region6: #{autoencoder_forward.1} parent=0 // pred_check
    _
  $region7: #{autoencoder_forward.1} parent=0 // pred_check_branch
    %13 = sbr.rel (0) target = $region9
  $region8: #{autoencoder_forward.1} parent=0 // pred_region
    _
  $region9: #{autoencoder_forward.1} parent=0 // pred_fallthru
    _
  // Predicated region
  $region10: #{autoencoder_forward.1} parent=0 // pred_check
    _
  $region11: #{autoencoder_forward.1} parent=0 // pred_check_branch
    %15 = sbr.rel (0) target = $region13
  $region12: #{autoencoder_forward.1} parent=0 // pred_region
    _
  $region13: #{autoencoder_forward.1} parent=0 // pred_fallthru
    _

</llo_original>
